<compile_context>
chip_gen: v6e
topology: v6e:2x2x1
jax: 0.10.0
libtpu: 0.0.40
codegen_flags: <defaults>
</compile_context>

<pallas_src>
import functools
import math

import jax
import jax.numpy as jnp
from jax.experimental import pallas as pl
from jax.experimental.pallas import tpu as pltpu


# dtypes loaded directly by the kernel and cast to f32 on-chip (the op is
# HBM-bandwidth bound, so the VPU cast is free and avoids a wrapper-side
# full read+write cast pass).
_INKERNEL_DTYPES = (
    jnp.float32, jnp.bfloat16, jnp.float16, jnp.int8, jnp.uint8, jnp.int32,
)

# Preferred lane widths for the flattened slab (multiples of 128 -> unmasked
# full-vreg stores).
_LANE_CANDIDATES = (512, 1024, 2048, 256, 128)

# ~8 MiB of f32 output per pipeline buffer.
_OUT_TILE_ELEMS = (8 * 1024 * 1024) // 4

# Column cap before the lane axis is tiled as well.
_COL_CAP = 4096
_COL_TILE = 2048


def _cdiv(a, b):
    return (a + b - 1) // b


def _round_up(a, b):
    return _cdiv(a, b) * b


def _normalization_kernel(x_ref, o_ref, *, mean, std):
    # In-kernel dtype cast + pure VPU body; mean/std are trace-time constants.
    x = x_ref[...].astype(jnp.float32)
    o_ref[...] = (x - mean) / std


def _pick_row_tile(rows, padded_cols, block_rows=None):
    """Row-tile size from the output byte budget (VMEM footprint uses the
    lane-padded column width)."""
    if block_rows is not None:                      # test hook
        return max(1, min(int(block_rows), rows))
    if rows < 64:
        return rows                                 # single full-extent block
    budget = max(32, (_OUT_TILE_ELEMS // padded_cols) // 32 * 32)
    n_tiles = max(_cdiv(rows, budget), 2)           # >=2 tiles keeps both v7x TCs busy
    if n_tiles % 2:                                  # even count balances the 2 TCs
        n_tiles += 1
    tm = _round_up(_cdiv(rows, n_tiles), 32)         # 32 | tm covers u8/bf16/f16/f32 tiling
    return min(tm, rows)


def normalization_forward(x, mean=127.5, std=127.5, *, block_rows=None, lane_width=None):
    """Reproduces Normalization.forward: (x - mean) / std, float32 output."""
    orig_shape = x.shape
    total = math.prod(orig_shape) if orig_shape else 1

    # mean/std are baked as trace-time constants (the module stores them as
    # fixed, non-trainable buffers, so this matches its usage).
    # TODO(synk): traced (jit-abstract) mean/std would need an SMEM scalar
    # operand; each distinct (mean, std) pair recompiles this kernel.
    mean_f = float(mean)
    std_f = float(std)

    if not any(x.dtype == d for d in _INKERNEL_DTYPES):
        # TODO(synk): exotic dtypes (f64/i64/bool) pay one wrapper-side cast pass.
        x = x.astype(jnp.float32)

    # ---- choose a zero-copy 2-D view (reshape only; no pad, no slice) ----
    cols = None
    if lane_width is not None and lane_width % 128 == 0 and total % lane_width == 0:
        cols = int(lane_width)
    else:
        for cand in _LANE_CANDIDATES:
            if total % cand == 0:
                cols = cand
                break
    if cols is not None:
        rows = total // cols          # lane-dense slab: unmasked full-vreg stores
    else:
        # total not a multiple of 128: natural 2-D collapse; Pallas masks the
        # partial boundary blocks, so there are still no extra HBM passes.
        if len(orig_shape) >= 2:
            rows, cols = math.prod(orig_shape[:-1]), orig_shape[-1]
        else:
            rows, cols = 1, total
    x2d = x.reshape(rows, cols)

    # ---- dtype-aware tile sizes ----
    tn = cols if cols <= _COL_CAP else _COL_TILE
    padded_tn = _round_up(tn, 128)
    tm = _pick_row_tile(rows, padded_tn, block_rows)

    grid = (_cdiv(rows, tm), _cdiv(cols, tn))

    in_itemsize = jnp.dtype(x.dtype).itemsize
    in_tile_bytes = tm * padded_tn * in_itemsize
    out_tile_bytes = tm * padded_tn * 4
    # Double-buffered in+out working set plus headroom, capped well under
    # v7x's 64 MiB physical VMEM (v5e/v6e have 128 MiB physical).
    vmem_limit = max(32 << 20,
                     min(2 * (in_tile_bytes + out_tile_bytes) + (8 << 20), 48 << 20))

    kernel = functools.partial(_normalization_kernel, mean=mean_f, std=std_f)

    out2d = pl.pallas_call(
        kernel,
        out_shape=jax.ShapeDtypeStruct((rows, cols), jnp.float32),
        grid=grid,
        in_specs=[pl.BlockSpec((tm, tn), lambda i, j: (i, j))],
        out_specs=pl.BlockSpec((tm, tn), lambda i, j: (i, j)),
        compiler_params=pltpu.CompilerParams(
            dimension_semantics=("parallel", "parallel"),
            vmem_limit_bytes=vmem_limit,
        ),
        cost_estimate=pl.CostEstimate(
            flops=2 * total,
            transcendentals=0,
            bytes_accessed=total * in_itemsize + total * 4,
        ),
    )(x2d)

    return out2d.reshape(orig_shape)


if __name__ == "__main__":
    key = jax.random.PRNGKey(0)
    k0, k1, k2 = jax.random.split(key, 3)

    # 1) uint8 "image pixels" (NCHW): lane-dense slab, in-kernel u8->f32 cast.
    x_u8 = jax.random.randint(k0, (2, 4, 16, 16), 0, 256, dtype=jnp.int32).astype(
        jnp.uint8
    )
    out = jax.block_until_ready(normalization_forward(x_u8, mean=127.5, std=127.5))
    ref = (x_u8.astype(jnp.float32) - 127.5) / 127.5
    assert out.shape == (2, 4, 16, 16)
    assert out.dtype == jnp.float32
    assert jnp.allclose(out, ref, atol=1e-5, rtol=1e-6)

    # 2) f32 input, multi-tile grid with a MASKED partial last row block
    #    (20 rows, block_rows=8 -> 3 row-tiles) and non-default mean/std.
    x_f32 = jax.random.normal(k1, (2, 4, 16, 20), dtype=jnp.float32)
    out2 = jax.block_until_ready(
        normalization_forward(x_f32, mean=0.5, std=2.0, block_rows=8, lane_width=128)
    )
    ref2 = (x_f32 - 0.5) / 2.0
    assert out2.shape == (2, 4, 16, 20)
    assert out2.dtype == jnp.float32
    assert jnp.allclose(out2, ref2, atol=1e-5, rtol=1e-6)

    # 3) total not divisible by 128 -> natural 2-D fallback, full-extent block,
    #    still no padding or slicing.
    x_odd = jax.random.normal(k2, (3, 5, 7), dtype=jnp.float32)
    out3 = jax.block_until_ready(normalization_forward(x_odd, mean=1.0, std=3.0))
    ref3 = (x_odd - 1.0) / 3.0
    assert out3.shape == (3, 5, 7)
    assert out3.dtype == jnp.float32
    assert jnp.allclose(out3, ref3, atol=1e-5, rtol=1e-6)

    print("KERNEL_OK")
</pallas_src>

<mosaic_0001>
module attributes {stable_mosaic.version = 11 : i64} {
  func.func @_normalization_kernel(%arg0: i32, %arg1: i32, %arg2: memref<4x512xi8, #tpu.memory_space<vmem>>, %arg3: memref<4x512xf32, #tpu.memory_space<vmem>>) attributes {dimension_semantics = [#tpu.dimension_semantics<parallel>, #tpu.dimension_semantics<parallel>], iteration_bounds = array<i64: 1, 1>, scalar_prefetch = 0 : i64, scratch_operands = 0 : i64, tpu.core_type = #tpu.core_type<tc>, window_params = [{transform_indices = @transform_0, window_bounds = array<i64: 4, 512>}, {transform_indices = @transform_1, window_bounds = array<i64: 4, 512>}]} {
    %c0 = arith.constant 0 : index
    %c0_0 = arith.constant 0 : index
    %0 = vector.load %arg2[%c0, %c0_0] : memref<4x512xi8, #tpu.memory_space<vmem>>, vector<4x512xi8>
    %1 = arith.uitofp %0 : vector<4x512xi8> to vector<4x512xf32>
    %cst = arith.constant 1.275000e+02 : f32
    %2 = vector.broadcast %cst : f32 to vector<4x512xf32>
    %3 = arith.subf %1, %2 : vector<4x512xf32>
    %cst_1 = arith.constant 1.275000e+02 : f32
    %4 = vector.broadcast %cst_1 : f32 to vector<4x512xf32>
    %5 = arith.divf %3, %4 : vector<4x512xf32>
    %c0_2 = arith.constant 0 : index
    %c0_3 = arith.constant 0 : index
    %6 = vector.load %arg3[%c0_2, %c0_3] : memref<4x512xf32, #tpu.memory_space<vmem>>, vector<4x512xf32>
    tpu.vector_store %arg3[%c0_2, %c0_3], %5 {strides = array<i32>} : memref<4x512xf32, #tpu.memory_space<vmem>>, vector<4x512xf32>,
    return
  }
  func.func @transform_0(%arg0: i32, %arg1: i32) -> (i32, i32) {
    %c0_i32 = arith.constant 0 : i32
    return %arg0, %arg1 : i32, i32
  }
  func.func @transform_1(%arg0: i32, %arg1: i32) -> (i32, i32) {
    %c0_i32 = arith.constant 0 : i32
    return %arg0, %arg1 : i32, i32
  }
}

</mosaic_0001>

<llo_original>
// kernel: tpu_custom_call.1
$region0: #{tpu_custom_call.1}
  #allocation0 [shape = 'u32[]', space=smem, size = 0x4, offset = 0x4, fixed_abs, tag = 'smem constant byte address 0x4 - core index']
  #allocation1 [shape = 'u32[144,128]{1,0:T(1,128)}', space=vmem, size = 0x12000, scoped, tag = 'internal scratch']
  %s0 = inlined_call_operand.hbm [shape: u8[4,512], index: 0, kind: input, shape index: {}]
  %s1 = inlined_call_operand.hbm [shape: f32[4,512], index: 1, kind: output, shape index: {}]
  %s2 = sld [smem:[#allocation0]]
  $region18: #{tpu_custom_call.1} parent=0
    _
  %s4 = ssub.s32 1, %s2
  %s5 = scalar_select 0, %s4, %s2
  $region1: #{tpu_custom_call.1} parent=0
    #allocation2 [shape = 'u8[2048]{0}', space=vmem, size = 0x800, scoped, tag = 'input window, operand 0, single buffered']
    #allocation3 [shape = 's32[1]{0}', space=sflag, size = 0x4, scoped, tag = 'scoped memory for tpu_custom_call.1']
    #allocation4 [shape = 's32[1]{0}', space=sflag, size = 0x4, scoped, tag = 'scoped memory for tpu_custom_call.1']
    #allocation5 [shape = 'u8[8192]{0}', space=vmem, size = 0x2000, scoped, tag = 'output window, operand 0, single buffered']
    %6 = vsyncpa [#allocation3], 0
    %7 = vsyncpa [#allocation4], 0
    // Predicated region
    $region2: #{tpu_custom_call.1} parent=1 // pred_check
      _
    $region3: #{tpu_custom_call.1} parent=1 // pred_check_branch
      %9 = sbr.rel (0) target = $region5
    $region4: #{tpu_custom_call.1} parent=1 // pred_region
      %s11 = ssub.s32 64, 64
      %12 = vsyncadd [#allocation3], %s11
      %s14 = sshll.u32 [#allocation2], 4
      %s15 = int_to_ptr.vmem [resolvable:$true] %s14
      %17 = dma.hbm_to_vmem [thread:$0]  %s0, 64, %s15, [#allocation3]
    $region5: #{tpu_custom_call.1} parent=1 // pred_fallthru
      _
    // Predicated region
    $region6: #{tpu_custom_call.1} parent=1 // pred_check
      _
    $region7: #{tpu_custom_call.1} parent=1 // pred_check_branch
      %19 = sbr.rel (0) target = $region9
    $region8: #{tpu_custom_call.1} parent=1 // pred_region
      %20 = dma.done [#allocation3], 64
    $region9: #{tpu_custom_call.1} parent=1 // pred_fallthru
      _
    %v21 = vld [vmem:[#allocation2] sm:$0xf]
    %v22 = vunpack.c.0.s8 %v21
    %v23 = vunpack.c.1.s8 %v21
    %v24 = vand.u32 %v22, 255
    %v25 = vand.u32 %v23, 255
    %v26 = vcvt.s32.f32 %v24
    %v27 = vcvt.s32.f32 %v25
    %v28 = vsub.f32 %v26, 127.5
    %v29 = vsub.f32 %v27, 127.5
    %v30 = vrcp.pop 127.5
    %v31 = vmul.f32 %v28, %v30
    %v32 = vmul.f32 %v29, %v30
    %33 = vst [vmem:[#allocation5] sm:$0xff] %v31
    %34 = vst [vmem:[#allocation5 + $0x8] sm:$0xff] %v32
    // Predicated region
    $region10: #{tpu_custom_call.1} parent=1 // pred_check
      _
    $region11: #{tpu_custom_call.1} parent=1 // pred_check_branch
      %36 = sbr.rel (0) target = $region13
    $region12: #{tpu_custom_call.1} parent=1 // pred_region
      %s38 = ssub.s32 256, 256
      %39 = vsyncadd [#allocation4], %s38
      %s41 = sshll.u32 [#allocation5], 4
      %s42 = int_to_ptr.vmem [resolvable:$true] %s41
      %44 = dma.vmem_to_hbm [thread:$0]  %s42, 256, %s1, [#allocation4]
    $region13: #{tpu_custom_call.1} parent=1 // pred_fallthru
      _
    // Predicated region
    $region14: #{tpu_custom_call.1} parent=1 // pred_check
      _
    $region15: #{tpu_custom_call.1} parent=1 // pred_check_branch
      %46 = sbr.rel (0) target = $region17
    $region16: #{tpu_custom_call.1} parent=1 // pred_region
      %47 = dma.done [#allocation4], 256
    $region17: #{tpu_custom_call.1} parent=1 // pred_fallthru
      _
    %48 = vsyncpa [#allocation3], 1
    %49 = vsyncpa [#allocation4], 1

</llo_original>
